<compile_context>
chip_gen: v7x
topology: tpu7x:2x2x1
jax: 0.10.0
libtpu: 0.0.40
codegen_flags: <defaults>
</compile_context>

<pallas_src>
import functools

import jax
import jax.numpy as jnp
from jax.experimental import pallas as pl
from jax.experimental.pallas import tpu as pltpu

LANE = 128  # TPU vreg lane width; interior feature dims are padded to this.


def _cdiv(a, b):
    return -(-a // b)


def _round_up(a, b):
    return _cdiv(a, b) * b


def _mlp_fused_kernel(x_ref, *rest, layer_flags):
    """Fused MLP: chain of (matmul + bias [+ relu] [+ residual]) over all layers.

    rest        = (w_0, b_0, ..., w_{L-1}, b_{L-1}, o_ref)
    layer_flags = ((apply_relu, add_residual), ...)  -- static per layer.
    """
    o_ref = rest[-1]
    params = rest[:-1]
    h = x_ref[...]                            # already in compute dtype (wrapper cast)
    for i, (apply_relu, add_residual) in enumerate(layer_flags):
        w = params[2 * i][...]
        b = params[2 * i + 1][...]
        # MXU matmul in the weight dtype (bf16 by default), f32 accumulation.
        y = jnp.dot(h.astype(w.dtype), w, preferred_element_type=jnp.float32)
        y = y + b.astype(jnp.float32)         # (1, d_out) broadcasts
        if apply_relu:                        # epilogue stays f32
            y = jnp.maximum(y, 0.0)
        if add_residual:                      # only when TRUE dims match (static)
            hw, yw = h.shape[-1], y.shape[-1]
            if hw == yw:
                r = h
            elif hw < yw:                     # un-padded input vs padded output
                r = jnp.concatenate(
                    [h, jnp.zeros((h.shape[0], yw - hw), h.dtype)], axis=-1)
            else:                             # padded input vs un-padded output
                r = h[:, :yw]                 # padded cols of h are exactly zero
            y = y + r.astype(jnp.float32)
        h = y
    o_ref[...] = h.astype(o_ref.dtype)


def prepare_mlp_params(weights, biases, *, compute_dtype=jnp.bfloat16):
    """Lane-pad and cast the MLP parameters ONCE (cache the result; do NOT redo per call)."""
    n_layers = len(weights)
    true_dims = [int(weights[0].shape[0])] + [int(w.shape[1]) for w in weights]
    params = []
    for i in range(n_layers):
        d_i, d_o = true_dims[i], true_dims[i + 1]
        # First-layer contraction dim and last-layer output dim stay un-padded
        # (a block dim equal to the full array dim is always legal); interior
        # dims pad to 128 lanes so intermediate activations stay lane-dense.
        in_w = d_i if i == 0 else _round_up(d_i, LANE)
        out_w = d_o if i == n_layers - 1 else _round_up(d_o, LANE)
        w_p = jnp.pad(weights[i],
                      ((0, in_w - d_i), (0, out_w - d_o))).astype(compute_dtype)
        b_p = jnp.pad(biases[i], (0, out_w - d_o)).reshape(1, out_w)
        params.append(w_p)                     # bf16 weights on v5e/v6e/v7x MXUs
        params.append(b_p.astype(jnp.float32))  # bias stays f32 (tiny)
    return tuple(params)


def mlp_forward_fused(x, *params, layer_flags, compute_dtype=jnp.bfloat16,
                      bm=512, single_buffer_weights=True):
    """Runs the whole MLP (all layers) in a single fused Pallas kernel."""
    n, d_in = x.shape
    n_layers = len(layer_flags)
    assert len(params) == 2 * n_layers
    weights_p = params[0::2]
    out_dim = int(weights_p[-1].shape[1])      # true output dim (last layer un-padded)
    out_dtype = x.dtype
    in_itemsize = jnp.dtype(compute_dtype).itemsize
    out_itemsize = jnp.dtype(out_dtype).itemsize

    # ---- batch tiling -------------------------------------------------------
    # Sublane alignment of the batch tile (8 for f32, 16 for bf16, 32 for fp8/i8).
    row_align = max(8, 32 // max(1, in_itemsize))
    # Keep >=2 tiles whenever the batch allows so the "parallel" grid axis can
    # be sharded across both TensorCores on v7x.
    bm_cap = _round_up(_cdiv(n, 2), row_align) if n > row_align else row_align
    bm = max(row_align, min((int(bm) // row_align) * row_align, bm_cap))

    # ---- VMEM budget (resident weights + pipeline buffers + f32 temporaries) -
    try:
        vmem_cap = int(pltpu.get_tpu_info().vmem_capacity_bytes)
    except Exception:                          # fallback if query unavailable
        vmem_cap = 64 * 1024 * 1024            # conservative (v7x-sized)
    vmem_limit = min(vmem_cap * 3 // 4, 110 * 1024 * 1024)   # ~48 MiB v7x, ~96 MiB v5e/v6e
    budget = int(vmem_limit * 0.9)

    param_bytes = sum(int(p.size) * p.dtype.itemsize for p in params)
    resident_w = param_bytes * (1 if single_buffer_weights else 2)
    widest = max([d_in] + [int(w.shape[1]) for w in weights_p])

    def vmem_need(bm_):
        act_in = 2 * bm_ * d_in * in_itemsize        # double-buffered input pipeline
        act_out = 2 * bm_ * out_dim * out_itemsize   # double-buffered output pipeline
        temps = 3 * bm_ * widest * 4                 # h / y / epilogue f32 temporaries
        return resident_w + act_in + act_out + temps

    while bm > row_align and vmem_need(bm) > budget:
        bm = max(row_align, ((bm // 2) // row_align) * row_align)
    assert vmem_need(bm) <= budget, (
        "TODO(synk): layer too large for fully-VMEM-resident weights; needs K/N "
        "tiling with an f32 accumulator.")

    num_tiles = _cdiv(n, bm)
    n_pad = num_tiles * bm

    # Row-pad ragged batches; cast activations to the compute dtype here (halves
    # input HBM traffic in bf16 mode; no in-kernel first-layer f32 round trip).
    x_p = x if n_pad == n else jnp.pad(x, ((0, n_pad - n), (0, 0)))
    x_p = x_p.astype(compute_dtype)

    # ---- specs ----------------------------------------------------------------
    wb_kwargs = {}
    if single_buffer_weights and hasattr(pl, "Buffered"):
        # Grid-invariant params are fetched once; single buffering halves their
        # VMEM residency vs. default double buffering.
        wb_kwargs = {"pipeline_mode": pl.Buffered(1)}

    in_specs = [pl.BlockSpec((bm, d_in), lambda i: (i, 0))]   # activations (batch-tiled)
    for li in range(n_layers):
        wi, wo = int(weights_p[li].shape[0]), int(weights_p[li].shape[1])
        in_specs.append(pl.BlockSpec((wi, wo), lambda i: (0, 0), **wb_kwargs))  # weight
        in_specs.append(pl.BlockSpec((1, wo), lambda i: (0, 0), **wb_kwargs))   # bias
    out_specs = pl.BlockSpec((bm, out_dim), lambda i: (i, 0))  # true-width output block

    flops = 2 * n_pad * sum(int(w.shape[0]) * int(w.shape[1]) for w in weights_p)
    bytes_accessed = (n_pad * d_in * in_itemsize + param_bytes
                      + n_pad * out_dim * out_itemsize)

    out_p = pl.pallas_call(
        functools.partial(_mlp_fused_kernel, layer_flags=tuple(layer_flags)),
        out_shape=jax.ShapeDtypeStruct((n_pad, out_dim), out_dtype),
        grid=(num_tiles,),
        in_specs=in_specs,
        out_specs=out_specs,
        compiler_params=pltpu.CompilerParams(
            dimension_semantics=("parallel",),        # batch axis -> megacore / 2 TCs
            vmem_limit_bytes=int(vmem_limit),
        ),
        cost_estimate=pl.CostEstimate(flops=int(flops), transcendentals=0,
                                      bytes_accessed=int(bytes_accessed)),
    )(x_p, *params)

    return out_p if n_pad == n else out_p[:n]


class MultiLayerPerceptronPallas:
    """JAX/Pallas port of the PyTorch MultiLayerPerceptron.

    Implements the module defaults (batch_norm=False, dropout=0,
    activation='relu'): every layer is Linear -> ReLU except the last (no
    activation), with an optional residual add whenever shapes match.
    """

    def __init__(self, input_dim, hidden_dims, short_cut=False, batch_norm=False,
                 activation="relu", dropout=0, key=None,
                 compute_dtype=jnp.bfloat16, bm=512):
        if batch_norm or dropout or activation != "relu":
            # TODO(synk): batch_norm / dropout / non-relu activations not implemented
            # (the PyTorch module defaults leave them disabled).
            raise NotImplementedError(
                "only the module defaults (no batch_norm/dropout, relu) are supported")
        if not isinstance(hidden_dims, (list, tuple)):
            hidden_dims = [hidden_dims]
        self.dims = [int(input_dim)] + [int(d) for d in hidden_dims]
        self.short_cut = bool(short_cut)
        self.compute_dtype = compute_dtype
        self.bm = int(bm)

        key = key if key is not None else jax.random.PRNGKey(0)
        self.weights, self.biases = [], []
        for i in range(len(self.dims) - 1):
            fan_in, fan_out = self.dims[i], self.dims[i + 1]
            key, kw, kb = jax.random.split(key, 3)
            bound = 1.0 / (fan_in ** 0.5)
            # stored as [in, out]  (PyTorch Linear weight is [out, in])
            self.weights.append(jax.random.uniform(
                kw, (fan_in, fan_out), jnp.float32, -bound, bound))
            self.biases.append(jax.random.uniform(
                kb, (fan_out,), jnp.float32, -bound, bound))

        n_layers = len(self.weights)
        self._layer_flags = tuple(
            (i < n_layers - 1, self.short_cut and self.dims[i] == self.dims[i + 1])
            for i in range(n_layers))
        self._param_cache = {}   # dtype name -> padded/cast params (prepared ONCE)
        self._fwd_cache = {}     # (dtype, bm, single_buffer) -> jitted forward
        self._single_buffer = True

    def _prepared_params(self, compute_dtype):
        k = jnp.dtype(compute_dtype).name
        if k not in self._param_cache:
            self._param_cache[k] = prepare_mlp_params(
                self.weights, self.biases, compute_dtype=compute_dtype)
        return self._param_cache[k]

    def _jitted_forward(self, compute_dtype, bm, single_buffer):
        k = (jnp.dtype(compute_dtype).name, int(bm), bool(single_buffer))
        if k not in self._fwd_cache:
            self._fwd_cache[k] = jax.jit(functools.partial(
                mlp_forward_fused,
                layer_flags=self._layer_flags,
                compute_dtype=compute_dtype,
                bm=int(bm),
                single_buffer_weights=bool(single_buffer)))
        return self._fwd_cache[k]

    def __call__(self, x, *, compute_dtype=None, bm=None):
        if not self.weights:                 # no layers -> identity (avoid NameError)
            return x
        compute_dtype = self.compute_dtype if compute_dtype is None else compute_dtype
        bm = self.bm if bm is None else bm
        params = self._prepared_params(compute_dtype)
        if self._single_buffer:
            try:
                return self._jitted_forward(compute_dtype, bm, True)(x, *params)
            except Exception:
                # pl.Buffered(1) unsupported on this jax/libtpu -> fall back to
                # the default double-buffered weight pipeline.
                self._single_buffer = False
        return self._jitted_forward(compute_dtype, bm, False)(x, *params)

    # plain-JAX reference (mirrors the PyTorch forward) for verification
    def reference(self, x):
        layer_input = x
        hidden = x
        n_layers = len(self.weights)
        for i in range(n_layers):
            hidden = jnp.dot(layer_input, self.weights[i],
                             precision=jax.lax.Precision.HIGHEST) + self.biases[i]
            if i < n_layers - 1:
                hidden = jnp.maximum(hidden, 0.0)
            if self.short_cut and hidden.shape == layer_input.shape:
                hidden = hidden + layer_input
            layer_input = hidden
        return hidden


if __name__ == "__main__":
    key = jax.random.PRNGKey(0)
    kx, kp, kp2 = jax.random.split(key, 3)

    batch, input_dim = 20, 32                 # ragged batch (exercises row padding)
    hidden_dims = [32, 16]                    # relu + residual, then narrow output
    x = jax.random.normal(kx, (batch, input_dim), jnp.float32)

    mlp = MultiLayerPerceptronPallas(input_dim, hidden_dims, short_cut=True, key=kp)
    ref = mlp.reference(x)

    # default path: bf16 weights/activations, f32 accumulation + epilogue
    out_bf16 = jax.block_until_ready(mlp(x))
    assert out_bf16.shape == (batch, hidden_dims[-1])
    assert out_bf16.dtype == x.dtype
    assert jnp.allclose(out_bf16, ref, atol=5e-2, rtol=5e-2), "bf16 mismatch vs reference"

    # f32 compute path (checks padding / residual / epilogue logic)
    out_f32 = jax.block_until_ready(mlp(x, compute_dtype=jnp.float32))
    assert out_f32.shape == (batch, hidden_dims[-1])
    assert jnp.allclose(out_f32, ref, atol=1e-2, rtol=1e-2), "f32 mismatch vs reference"

    # second config: residual also on the LAST layer (padded-h vs un-padded-y path)
    mlp2 = MultiLayerPerceptronPallas(input_dim, [32, 32], short_cut=True, key=kp2)
    ref2 = mlp2.reference(x)
    out2 = jax.block_until_ready(mlp2(x, compute_dtype=jnp.float32))
    assert out2.shape == (batch, 32)
    assert jnp.allclose(out2, ref2, atol=1e-2, rtol=1e-2), "config-2 mismatch vs reference"

    print("KERNEL_OK")
</pallas_src>

<mosaic_0001>
module attributes {stable_mosaic.version = 11 : i64} {
  func.func @_mlp_fused_kernel(%arg0: i32, %arg1: memref<16x32xbf16, #tpu.memory_space<vmem>>, %arg2: memref<32x128xbf16, #tpu.memory_space<vmem>>, %arg3: memref<1x128xf32, #tpu.memory_space<vmem>>, %arg4: memref<128x16xbf16, #tpu.memory_space<vmem>>, %arg5: memref<1x16xf32, #tpu.memory_space<vmem>>, %arg6: memref<16x16xf32, #tpu.memory_space<vmem>>) attributes {dimension_semantics = [#tpu.dimension_semantics<parallel>], iteration_bounds = array<i64: 2>, scalar_prefetch = 0 : i64, scratch_operands = 0 : i64, tpu.core_type = #tpu.core_type<tc>, window_params = [{transform_indices = @transform_0, window_bounds = array<i64: 16, 32>}, {pipeline_mode = #tpu.pipeline_mode<synchronous>, transform_indices = @transform_1, window_bounds = array<i64: 32, 128>}, {pipeline_mode = #tpu.pipeline_mode<synchronous>, transform_indices = @transform_2, window_bounds = array<i64: 1, 128>}, {pipeline_mode = #tpu.pipeline_mode<synchronous>, transform_indices = @transform_3, window_bounds = array<i64: 128, 16>}, {pipeline_mode = #tpu.pipeline_mode<synchronous>, transform_indices = @transform_4, window_bounds = array<i64: 1, 16>}, {transform_indices = @transform_5, window_bounds = array<i64: 16, 16>}]} {
    %c0 = arith.constant 0 : index
    %c0_0 = arith.constant 0 : index
    %0 = vector.load %arg1[%c0, %c0_0] : memref<16x32xbf16, #tpu.memory_space<vmem>>, vector<16x32xbf16>
    %c0_1 = arith.constant 0 : index
    %c0_2 = arith.constant 0 : index
    %1 = vector.load %arg2[%c0_1, %c0_2] : memref<32x128xbf16, #tpu.memory_space<vmem>>, vector<32x128xbf16>
    %c0_3 = arith.constant 0 : index
    %c0_4 = arith.constant 0 : index
    %2 = vector.load %arg3[%c0_3, %c0_4] : memref<1x128xf32, #tpu.memory_space<vmem>>, vector<1x128xf32>
    %cst = arith.constant dense<0.000000e+00> : vector<16x128xf32>
    %3 = tpu.matmul %0, %1, %cst {dimension_numbers = #tpu.dot_dimension_numbers<[1], [0], [0], [1], [0, 0, 1, 1], [], []>} : vector<16x32xbf16>, vector<32x128xbf16>, vector<16x128xf32> -> vector<16x128xf32>
    %4 = vector.broadcast %2 : vector<1x128xf32> to vector<16x128xf32>
    %5 = arith.addf %3, %4 : vector<16x128xf32>
    %cst_5 = arith.constant 0.000000e+00 : f32
    %6 = vector.broadcast %cst_5 : f32 to vector<16x128xf32>
    %7 = arith.maximumf %5, %6 : vector<16x128xf32>
    %cst_6 = arith.constant 0.000000e+00 : bf16
    %8 = vector.broadcast %cst_6 : bf16 to vector<16x96xbf16>
    %9 = tpu.concatenate %0, %8 in 1 : vector<16x32xbf16>, vector<16x96xbf16> -> vector<16x128xbf16>
    %10 = arith.extf %9 : vector<16x128xbf16> to vector<16x128xf32>
    %11 = arith.addf %7, %10 : vector<16x128xf32>
    %c0_7 = arith.constant 0 : index
    %c0_8 = arith.constant 0 : index
    %12 = vector.load %arg4[%c0_7, %c0_8] : memref<128x16xbf16, #tpu.memory_space<vmem>>, vector<128x16xbf16>
    %c0_9 = arith.constant 0 : index
    %c0_10 = arith.constant 0 : index
    %13 = vector.load %arg5[%c0_9, %c0_10] : memref<1x16xf32, #tpu.memory_space<vmem>>, vector<1x16xf32>
    %14 = arith.truncf %11 : vector<16x128xf32> to vector<16x128xbf16>
    %cst_11 = arith.constant dense<0.000000e+00> : vector<16x16xf32>
    %15 = tpu.matmul %14, %12, %cst_11 {dimension_numbers = #tpu.dot_dimension_numbers<[1], [0], [0], [1], [0, 0, 1, 1], [], []>} : vector<16x128xbf16>, vector<128x16xbf16>, vector<16x16xf32> -> vector<16x16xf32>
    %16 = vector.broadcast %13 : vector<1x16xf32> to vector<16x16xf32>
    %17 = arith.addf %15, %16 : vector<16x16xf32>
    %c0_12 = arith.constant 0 : index
    %c0_13 = arith.constant 0 : index
    %18 = vector.load %arg6[%c0_12, %c0_13] : memref<16x16xf32, #tpu.memory_space<vmem>>, vector<16x16xf32>
    tpu.vector_store %arg6[%c0_12, %c0_13], %17 {strides = array<i32>} : memref<16x16xf32, #tpu.memory_space<vmem>>, vector<16x16xf32>,
    return
  }
  func.func @transform_0(%arg0: i32) -> (i32, i32) {
    %c0_i32 = arith.constant 0 : i32
    %c0_i32_0 = arith.constant 0 : i32
    return %arg0, %c0_i32 : i32, i32
  }
  func.func @transform_1(%arg0: i32) -> (i32, i32) {
    %c0_i32 = arith.constant 0 : i32
    %c0_i32_0 = arith.constant 0 : i32
    %c0_i32_1 = arith.constant 0 : i32
    return %c0_i32, %c0_i32_0 : i32, i32
  }
  func.func @transform_2(%arg0: i32) -> (i32, i32) {
    %c0_i32 = arith.constant 0 : i32
    %c0_i32_0 = arith.constant 0 : i32
    %c0_i32_1 = arith.constant 0 : i32
    return %c0_i32, %c0_i32_0 : i32, i32
  }
  func.func @transform_3(%arg0: i32) -> (i32, i32) {
    %c0_i32 = arith.constant 0 : i32
    %c0_i32_0 = arith.constant 0 : i32
    %c0_i32_1 = arith.constant 0 : i32
    return %c0_i32, %c0_i32_0 : i32, i32
  }
  func.func @transform_4(%arg0: i32) -> (i32, i32) {
    %c0_i32 = arith.constant 0 : i32
    %c0_i32_0 = arith.constant 0 : i32
    %c0_i32_1 = arith.constant 0 : i32
    return %c0_i32, %c0_i32_0 : i32, i32
  }
  func.func @transform_5(%arg0: i32) -> (i32, i32) {
    %c0_i32 = arith.constant 0 : i32
    %c0_i32_0 = arith.constant 0 : i32
    return %arg0, %c0_i32 : i32, i32
  }
}

module attributes {stable_mosaic.version = 11 : i64} {
  func.func @_mlp_fused_kernel(%arg0: i32, %arg1: memref<16x32xbf16, #tpu.memory_space<vmem>>, %arg2: memref<32x128xbf16, #tpu.memory_space<vmem>>, %arg3: memref<1x128xf32, #tpu.memory_space<vmem>>, %arg4: memref<128x16xbf16, #tpu.memory_space<vmem>>, %arg5: memref<1x16xf32, #tpu.memory_space<vmem>>, %arg6: memref<16x16xf32, #tpu.memory_space<vmem>>) attributes {dimension_semantics = [#tpu.dimension_semantics<parallel>], iteration_bounds = array<i64: 2>, scalar_prefetch = 0 : i64, scratch_operands = 0 : i64, tpu.core_type = #tpu.core_type<tc>, window_params = [{transform_indices = @transform_0, window_bounds = array<i64: 16, 32>}, {pipeline_mode = #tpu.pipeline_mode<synchronous>, transform_indices = @transform_1, window_bounds = array<i64: 32, 128>}, {pipeline_mode = #tpu.pipeline_mode<synchronous>, transform_indices = @transform_2, window_bounds = array<i64: 1, 128>}, {pipeline_mode = #tpu.pipeline_mode<synchronous>, transform_indices = @transform_3, window_bounds = array<i64: 128, 16>}, {pipeline_mode = #tpu.pipeline_mode<synchronous>, transform_indices = @transform_4, window_bounds = array<i64: 1, 16>}, {transform_indices = @transform_5, window_bounds = array<i64: 16, 16>}]} {
    %c0 = arith.constant 0 : index
    %c0_0 = arith.constant 0 : index
    %0 = vector.load %arg1[%c0, %c0_0] : memref<16x32xbf16, #tpu.memory_space<vmem>>, vector<16x32xbf16>
    %c0_1 = arith.constant 0 : index
    %c0_2 = arith.constant 0 : index
    %1 = vector.load %arg2[%c0_1, %c0_2] : memref<32x128xbf16, #tpu.memory_space<vmem>>, vector<32x128xbf16>
    %c0_3 = arith.constant 0 : index
    %c0_4 = arith.constant 0 : index
    %2 = vector.load %arg3[%c0_3, %c0_4] : memref<1x128xf32, #tpu.memory_space<vmem>>, vector<1x128xf32>
    %cst = arith.constant dense<0.000000e+00> : vector<16x128xf32>
    %3 = tpu.matmul %0, %1, %cst {dimension_numbers = #tpu.dot_dimension_numbers<[1], [0], [0], [1], [0, 0, 1, 1], [], []>} : vector<16x32xbf16>, vector<32x128xbf16>, vector<16x128xf32> -> vector<16x128xf32>
    %4 = vector.broadcast %2 : vector<1x128xf32> to vector<16x128xf32>
    %5 = arith.addf %3, %4 : vector<16x128xf32>
    %cst_5 = arith.constant 0.000000e+00 : f32
    %6 = vector.broadcast %cst_5 : f32 to vector<16x128xf32>
    %7 = arith.maximumf %5, %6 : vector<16x128xf32>
    %cst_6 = arith.constant 0.000000e+00 : bf16
    %8 = vector.broadcast %cst_6 : bf16 to vector<16x96xbf16>
    %9 = tpu.concatenate %0, %8 in 1 : vector<16x32xbf16>, vector<16x96xbf16> -> vector<16x128xbf16>
    %10 = arith.extf %9 : vector<16x128xbf16> to vector<16x128xf32>
    %11 = arith.addf %7, %10 : vector<16x128xf32>
    %c0_7 = arith.constant 0 : index
    %c0_8 = arith.constant 0 : index
    %12 = vector.load %arg4[%c0_7, %c0_8] : memref<128x16xbf16, #tpu.memory_space<vmem>>, vector<128x16xbf16>
    %c0_9 = arith.constant 0 : index
    %c0_10 = arith.constant 0 : index
    %13 = vector.load %arg5[%c0_9, %c0_10] : memref<1x16xf32, #tpu.memory_space<vmem>>, vector<1x16xf32>
    %14 = arith.truncf %11 : vector<16x128xf32> to vector<16x128xbf16>
    %cst_11 = arith.constant dense<0.000000e+00> : vector<16x16xf32>
    %15 = tpu.matmul %14, %12, %cst_11 {dimension_numbers = #tpu.dot_dimension_numbers<[1], [0], [0], [1], [0, 0, 1, 1], [], []>} : vector<16x128xbf16>, vector<128x16xbf16>, vector<16x16xf32> -> vector<16x16xf32>
    %16 = vector.broadcast %13 : vector<1x16xf32> to vector<16x16xf32>
    %17 = arith.addf %15, %16 : vector<16x16xf32>
    %c0_12 = arith.constant 0 : index
    %c0_13 = arith.constant 0 : index
    %18 = vector.load %arg6[%c0_12, %c0_13] : memref<16x16xf32, #tpu.memory_space<vmem>>, vector<16x16xf32>
    tpu.vector_store %arg6[%c0_12, %c0_13], %17 {strides = array<i32>} : memref<16x16xf32, #tpu.memory_space<vmem>>, vector<16x16xf32>,
    return
  }
  func.func @transform_0(%arg0: i32) -> (i32, i32) {
    %c0_i32 = arith.constant 0 : i32
    %c0_i32_0 = arith.constant 0 : i32
    return %arg0, %c0_i32 : i32, i32
  }
  func.func @transform_1(%arg0: i32) -> (i32, i32) {
    %c0_i32 = arith.constant 0 : i32
    %c0_i32_0 = arith.constant 0 : i32
    %c0_i32_1 = arith.constant 0 : i32
    return %c0_i32, %c0_i32_0 : i32, i32
  }
  func.func @transform_2(%arg0: i32) -> (i32, i32) {
    %c0_i32 = arith.constant 0 : i32
    %c0_i32_0 = arith.constant 0 : i32
    %c0_i32_1 = arith.constant 0 : i32
    return %c0_i32, %c0_i32_0 : i32, i32
  }
  func.func @transform_3(%arg0: i32) -> (i32, i32) {
    %c0_i32 = arith.constant 0 : i32
    %c0_i32_0 = arith.constant 0 : i32
    %c0_i32_1 = arith.constant 0 : i32
    return %c0_i32, %c0_i32_0 : i32, i32
  }
  func.func @transform_4(%arg0: i32) -> (i32, i32) {
    %c0_i32 = arith.constant 0 : i32
    %c0_i32_0 = arith.constant 0 : i32
    %c0_i32_1 = arith.constant 0 : i32
    return %c0_i32, %c0_i32_0 : i32, i32
  }
  func.func @transform_5(%arg0: i32) -> (i32, i32) {
    %c0_i32 = arith.constant 0 : i32
    %c0_i32_0 = arith.constant 0 : i32
    return %arg0, %c0_i32 : i32, i32
  }
}

</mosaic_0001>

<llo_original>
// kernel: mlp_forward_fused.1
$region0: #{mlp_forward_fused.1}
  #allocation0 [shape = 'u32[]', space=smem, size = 0x4, offset = 0x4, fixed_abs, tag = 'smem constant byte address 0x4 - core index']
  #allocation1 [shape = 'u32[144,128]{1,0:T(1,128)}', space=vmem, size = 0x12000, scoped, tag = 'internal scratch']
  %s0 = inlined_call_operand.vmem [shape: bf16[32,32], index: 0, kind: input, shape index: {}]
  %s1 = inlined_call_operand.vmem [shape: bf16[32,128], index: 1, kind: input, shape index: {}]
  %s2 = inlined_call_operand.vmem [shape: f32[1,128], index: 2, kind: input, shape index: {}]
  %s3 = inlined_call_operand.vmem [shape: bf16[128,16], index: 3, kind: input, shape index: {}]
  %s4 = inlined_call_operand.vmem [shape: f32[1,16], index: 4, kind: input, shape index: {}]
  %s5 = inlined_call_operand.vmem [shape: f32[32,16], index: 5, kind: output, shape index: {}]
  %s6 = sld [smem:[#allocation0]]
  $region53: #{mlp_forward_fused.1} parent=0
    _
  %s8 = ssub.s32 1, %s6
  %s9 = scalar_select 0, %s8, %s6
  loop: start=0, step=1, limit=4
  $region2: #{mlp_forward_fused.1} parent=0 // loop_pre_header
    _
  $region3: #{mlp_forward_fused.1} parent=0 // loop_header
    %s11 = sphi 0, %s15
    %p12 = scmp.ge.s32.totalorder %s11, 4
    %s21 = sphi 0, %s23
    %s24 = sphi 0, %s21
    %s25 = sphi 0, %s24
    %s41 = sphi 0, %s25
    %s45 = sphi 0, %s45
    %s47 = sphi 0, %s45
    %s48 = sphi 0, %s47
    %s62 = sphi 0, %s48
    %s66 = sphi 0, %s66
    %s68 = sphi 0, %s66
    %s69 = sphi 0, %s68
    %s83 = sphi 0, %s69
    %s87 = sphi 0, %s87
    %s89 = sphi 0, %s87
    %s90 = sphi 0, %s89
    %s104 = sphi 0, %s90
    %s108 = sphi 0, %s108
    %s110 = sphi 0, %s108
    %s111 = sphi 0, %s110
    %s125 = sphi 0, %s111
    %s131 = sphi 0, %s133
    %s134 = sphi 0, %s131
    %s135 = sphi 0, %s134
    %s151 = sphi 0, %s135
  $region4: #{mlp_forward_fused.1} parent=0 // loop_header_branch
    %14 = sbr.rel (%p12) target = $region8
  $region5: #{mlp_forward_fused.1} parent=0 // loop_body
    %s16 = ssub.s32 %s11, 1
    %s17 = ssub.s32 %s11, 2
    %s18 = sadd.s32 %s11, 1
    %s19 = ssub.s32 %s11, %s18
    %p20 = scmp.eq.s32.totalorder %s19, 0
    %s22 = sadd.s32 %s21, 1
    %s23 = scalar_select %p20, %s21, %s22
    %p26 = pneg %p20
    %p27 = scmp.eq.s32.totalorder %s11, 1
    %p28 = por %p26, %p27
    %p29 = scmp.ne.s32.totalorder %s21, %s24
    %p30 = scmp.eq.s32.totalorder %s11, 0
    %p31 = por %p29, %p30
    %p32 = scmp.ne.s32.totalorder %s21, %s24
    %p33 = scmp.eq.s32.totalorder %s16, 1
    %p34 = por %p32, %p33
    %p35 = scmp.ne.s32.totalorder %s24, %s25
    %p36 = scmp.eq.s32.totalorder %s16, 0
    %p37 = por %p35, %p36
    %p38 = scmp.ne.s32.totalorder %s24, %s25
    %p39 = scmp.eq.s32.totalorder %s17, 1
    %p40 = por %p38, %p39
    %p42 = scmp.ne.s32.totalorder %s25, %s41
    %p43 = scmp.eq.s32.totalorder %s17, 0
    %p44 = por %p42, %p43
    %s46 = sadd.s32 %s45, 1
    %p49 = scmp.eq.s32.totalorder %s11, 1
    %p50 = scmp.ne.s32.totalorder %s45, %s47
    %p51 = scmp.eq.s32.totalorder %s11, 0
    %p52 = por %p50, %p51
    %p53 = scmp.ne.s32.totalorder %s45, %s47
    %p54 = scmp.eq.s32.totalorder %s16, 1
    %p55 = por %p53, %p54
    %p56 = scmp.ne.s32.totalorder %s47, %s48
    %p57 = scmp.eq.s32.totalorder %s16, 0
    %p58 = por %p56, %p57
    %p59 = scmp.ne.s32.totalorder %s47, %s48
    %p60 = scmp.eq.s32.totalorder %s17, 1
    %p61 = por %p59, %p60
    %p63 = scmp.ne.s32.totalorder %s48, %s62
    %p64 = scmp.eq.s32.totalorder %s17, 0
    %p65 = por %p63, %p64
    %s67 = sadd.s32 %s66, 1
    %p70 = scmp.eq.s32.totalorder %s11, 1
    %p71 = scmp.ne.s32.totalorder %s66, %s68
    %p72 = scmp.eq.s32.totalorder %s11, 0
    %p73 = por %p71, %p72
    %p74 = scmp.ne.s32.totalorder %s66, %s68
    %p75 = scmp.eq.s32.totalorder %s16, 1
    %p76 = por %p74, %p75
    %p77 = scmp.ne.s32.totalorder %s68, %s69
    %p78 = scmp.eq.s32.totalorder %s16, 0
    %p79 = por %p77, %p78
    %p80 = scmp.ne.s32.totalorder %s68, %s69
    %p81 = scmp.eq.s32.totalorder %s17, 1
    %p82 = por %p80, %p81
    %p84 = scmp.ne.s32.totalorder %s69, %s83
    %p85 = scmp.eq.s32.totalorder %s17, 0
    %p86 = por %p84, %p85
    %s88 = sadd.s32 %s87, 1
    %p91 = scmp.eq.s32.totalorder %s11, 1
    %p92 = scmp.ne.s32.totalorder %s87, %s89
    %p93 = scmp.eq.s32.totalorder %s11, 0
    %p94 = por %p92, %p93
    %p95 = scmp.ne.s32.totalorder %s87, %s89
    %p96 = scmp.eq.s32.totalorder %s16, 1
    %p97 = por %p95, %p96
    %p98 = scmp.ne.s32.totalorder %s89, %s90
    %p99 = scmp.eq.s32.totalorder %s16, 0
    %p100 = por %p98, %p99
    %p101 = scmp.ne.s32.totalorder %s89, %s90
    %p102 = scmp.eq.s32.totalorder %s17, 1
    %p103 = por %p101, %p102
    %p105 = scmp.ne.s32.totalorder %s90, %s104
    %p106 = scmp.eq.s32.totalorder %s17, 0
    %p107 = por %p105, %p106
    %s109 = sadd.s32 %s108, 1
    %p112 = scmp.eq.s32.totalorder %s11, 1
    %p113 = scmp.ne.s32.totalorder %s108, %s110
    %p114 = scmp.eq.s32.totalorder %s11, 0
    %p115 = por %p113, %p114
    %p116 = scmp.ne.s32.totalorder %s108, %s110
    %p117 = scmp.eq.s32.totalorder %s16, 1
    %p118 = por %p116, %p117
    %p119 = scmp.ne.s32.totalorder %s110, %s111
    %p120 = scmp.eq.s32.totalorder %s16, 0
    %p121 = por %p119, %p120
    %p122 = scmp.ne.s32.totalorder %s110, %s111
    %p123 = scmp.eq.s32.totalorder %s17, 1
    %p124 = por %p122, %p123
    %p126 = scmp.ne.s32.totalorder %s111, %s125
    %p127 = scmp.eq.s32.totalorder %s17, 0
    %p128 = por %p126, %p127
    %s129 = ssub.s32 %s11, %s18
    %p130 = scmp.eq.s32.totalorder %s129, 0
    %s132 = sadd.s32 %s131, 1
    %s133 = scalar_select %p130, %s131, %s132
    %p136 = pneg %p130
    %p137 = scmp.eq.s32.totalorder %s11, 1
    %p138 = por %p136, %p137
    %p139 = scmp.ne.s32.totalorder %s131, %s134
    %p140 = scmp.eq.s32.totalorder %s11, 0
    %p141 = por %p139, %p140
    %p142 = scmp.ne.s32.totalorder %s131, %s134
    %p143 = scmp.eq.s32.totalorder %s16, 1
    %p144 = por %p142, %p143
    %p145 = scmp.ne.s32.totalorder %s134, %s135
    %p146 = scmp.eq.s32.totalorder %s16, 0
    %p147 = por %p145, %p146
    %p148 = scmp.ne.s32.totalorder %s134, %s135
    %p149 = scmp.eq.s32.totalorder %s17, 1
    %p150 = por %p148, %p149
    %p152 = scmp.ne.s32.totalorder %s135, %s151
    %p153 = scmp.eq.s32.totalorder %s17, 0
    %p154 = por %p152, %p153
    %p155 = scmp.le.s32.totalorder 1, %s11
    %p156 = scmp.lt.s32.totalorder %s11, 3
    %p157 = pnand %p155, %p156
    %p158 = pneg %p157
    // Predicated region
    $region9: #{mlp_forward_fused.1} parent=5 // pred_check
      _
    $region10: #{mlp_forward_fused.1} parent=5 // pred_check_branch
      %160 = sbr.rel (%p157) target = $region12
    $region11: #{mlp_forward_fused.1} parent=5 // pred_region
      %s161 = ssub.s32 %s11, 1
      // Predicated region
      $region13: #{mlp_forward_fused.1} parent=11 // pred_check
        %p162 = pneg %p58
      $region14: #{mlp_forward_fused.1} parent=11 // pred_check_branch
        %164 = sbr.rel (%p162) target = $region16
      $region15: #{mlp_forward_fused.1} parent=11 // pred_region
        _
      $region16: #{mlp_forward_fused.1} parent=11 // pred_fallthru
        _
      // Predicated region
      $region17: #{mlp_forward_fused.1} parent=11 // pred_check
        %p165 = pneg %p79
      $region18: #{mlp_forward_fused.1} parent=11 // pred_check_branch
        %167 = sbr.rel (%p165) target = $region20
      $region19: #{mlp_forward_fused.1} parent=11 // pred_region
        _
      $region20: #{mlp_forward_fused.1} parent=11 // pred_fallthru
        _
      // Predicated region
      $region21: #{mlp_forward_fused.1} parent=11 // pred_check
        %p168 = pneg %p100
      $region22: #{mlp_forward_fused.1} parent=11 // pred_check_branch
        %170 = sbr.rel (%p168) target = $region24
      $region23: #{mlp_forward_fused.1} parent=11 // pred_region
        _
      $region24: #{mlp_forward_fused.1} parent=11 // pred_fallthru
        _
      // Predicated region
      $region25: #{mlp_forward_fused.1} parent=11 // pred_check
        %p171 = pneg %p121
      $region26: #{mlp_forward_fused.1} parent=11 // pred_check_branch
        %173 = sbr.rel (%p171) target = $region28
      $region27: #{mlp_forward_fused.1} parent=11 // pred_region
        _
      $region28: #{mlp_forward_fused.1} parent=11 // pred_fallthru
        _
    $region12: #{mlp_forward_fused.1} parent=5 // pred_fallthru
      _
    %p174 = scmp.lt.s32.totalorder %s11, 2
    // Predicated region
    $region29: #{mlp_forward_fused.1} parent=5 // pred_check
      %p175 = pneg %p174
    $region30: #{mlp_forward_fused.1} parent=5 // pred_check_branch
      %177 = sbr.rel (%p175) target = $region32
    $region31: #{mlp_forward_fused.1} parent=5 // pred_region
      // Predicated region
      $region33: #{mlp_forward_fused.1} parent=31 // pred_check
        %p178 = pneg %p31
      $region34: #{mlp_forward_fused.1} parent=31 // pred_check_branch
        %180 = sbr.rel (%p178) target = $region36
      $region35: #{mlp_forward_fused.1} parent=31 // pred_region
        %s181 = smul.u32 2, %s11
        %p182 = scmp.lt.s32.totalorder %s181, 3
        %s183 = scalar_select %p182, %s181, 3
        %s184 = smul.addr %s183, 4
        %s185 = scalar_lea.vmem %s0, %s184
        %s186 = smul.u32 2, %s11
      $region36: #{mlp_forward_fused.1} parent=31 // pred_fallthru
        _
    $region32: #{mlp_forward_fused.1} parent=5 // pred_fallthru
      _
    %p187 = scmp.le.s32.totalorder 1, %s11
    %p188 = scmp.lt.s32.totalorder %s11, 3
    %p189 = pnand %p187, %p188
    %p190 = pneg %p189
    // Predicated region
    $region37: #{mlp_forward_fused.1} parent=5 // pred_check
      _
    $region38: #{mlp_forward_fused.1} parent=5 // pred_check_branch
      %192 = sbr.rel (%p189) target = $region40
    $region39: #{mlp_forward_fused.1} parent=5 // pred_region
      %s193 = ssub.s32 %s11, 1
      %s194 = smul.u32 2, %s16
      %p195 = scmp.lt.s32.totalorder %s194, 3
      %s196 = scalar_select %p195, %s194, 3
      %s197 = smul.addr %s196, 4
      %s198 = scalar_lea.vmem %s0, %s197
      %p199 = pneg %p37
      %p200 = pneg %p34
      %p201 = pneg %p58
      %p202 = pneg %p55
      %p203 = pneg %p79
      %p204 = pneg %p76
      %p205 = pneg %p100
      %p206 = pneg %p97
      %p207 = pneg %p121
      %p208 = pneg %p118
      %p209 = pneg %p147
      %p210 = pneg %p144
      %s211 = smul.u32 2, %s16
      %p212 = scmp.lt.s32.totalorder %s211, 3
      %s213 = scalar_select %p212, %s211, 3
      %s214 = smul.addr %s213, 8
      %s215 = scalar_lea.vmem %s5, %s214
      %s216 = smul.u32 2, %s16
      %p217 = scmp.lt.s32.totalorder %s216, 3
      %s218 = scalar_select %p217, %s216, 3
      %s219 = smul.addr %s218, 4
      %s220 = scalar_lea.vmem %s0, %s219
      %s221 = smul.u32 2, %s16
      %s222 = smul.u32 2, %s16
      %p223 = scmp.lt.s32.totalorder %s222, 3
      %s224 = scalar_select %p223, %s222, 3
      %s225 = smul.addr %s224, 8
      %s226 = scalar_lea.vmem %s5, %s225
      %s227 = smul.u32 2, %s16
      %v229 = vld [vmem:[%s220] sm:$0xf]
      %v230 = vld [vmem:[%s220 + $0x4] sm:$0xf]
      %v231 = vld [vmem:[%s1] sm:$0xf]
      %v232 = vld [vmem:[%s1 + $0x4] sm:$0xf]
      %v233 = vld [vmem:[%s1 + $0x8] sm:$0xf]
      %v234 = vld [vmem:[%s1 + $0xc] sm:$0xf]
      %v235 = vld [vmem:[%s2] sm:$0x1]
      %v237 = vlaneseq
      %v238 = vshrl.u32 %v237, 7
      %v239 = vsub.s32 0, %v238
      %v240 = vrot.slane %v235, %v239
      %v244 = vunpack.c.l.b16 %v229
      %v245 = vunpack.c.l.b16 %v230
      %v246 = vpack.c.b16 %v245, %v244
      %v251 = vunpack.c.l.b16 %v231
      %v252 = vunpack.c.l.b16 %v232
      %v253 = vunpack.c.l.b16 %v233
      %v254 = vunpack.c.l.b16 %v234
      %v255 = vpack.c.b16 %v252, %v251
      %v256 = vpack.c.b16 %v254, %v253
      %vm259 = vcmask 261120
      %v261 = vsel %vm259, %v246, 0
      %263 = vmatprep.subr.bf16.mxu0 0
      %264 = vmatpush1.bf16.msra.mxu0 %v255
      %265 = vmatprep.subr.bf16.mxu0 0
      %266 = vmatpush1.bf16.msra.mxu0 %v256
      %267 = vmatprep.subr.bf16.mxu0 0
      %268 = vmatpush1.bf16.msra.mxu0 0
      %269 = vmatprep.subr.bf16.mxu0 0
      %270 = vmatpush1.bf16.msra.mxu0 0
      %271 = vmatprep.subr.bf16.mxu0 0
      %272 = vmatpush1.bf16.msra.mxu0 0
      %273 = vmatprep.subr.bf16.mxu0 0
      %274 = vmatpush1.bf16.msra.mxu0 0
      %275 = vmatprep.subr.bf16.mxu0 0
      %276 = vmatpush1.bf16.msra.mxu0 0
      %277 = vmatprep.subr.bf16.mxu0 0
      %278 = vmatpush1.bf16.msra.mxu0 0
      %279 = vmatprep.subr.bf16.mxu0 0
      %280 = vmatpush1.bf16.msra.mxu0 0
      %281 = vmatprep.subr.bf16.mxu0 0
      %282 = vmatpush1.bf16.msra.mxu0 0
      %283 = vmatprep.subr.bf16.mxu0 0
      %284 = vmatpush1.bf16.msra.mxu0 0
      %285 = vmatprep.subr.bf16.mxu0 0
      %286 = vmatpush1.bf16.msra.mxu0 0
      %287 = vmatprep.subr.bf16.mxu0 0
      %288 = vmatpush1.bf16.msra.mxu0 0
      %289 = vmatprep.subr.bf16.mxu0 0
      %290 = vmatpush1.bf16.msra.mxu0 0
      %291 = vmatprep.subr.bf16.mxu0 0
      %292 = vmatpush1.bf16.msra.mxu0 0
      %293 = vmatprep.subr.bf16.mxu0 0
      %294 = vmatpush1.bf16.msra.mxu0 0
      %295 = vmatprep.mubr.bf16.mxu0 0
      %296 = vmatmul.mubr.bf16.gmra.mrb[0].mxu0 %v261
      %v297 = vpop.f32.mrb[0].mxu0
      %v298 = vadd.f32 %v240, %v297
      %v299 = vpop.f32.mrb[0].mxu0
      %v300 = vpop.f32.mrb[0].mxu0
      %v301 = vadd.f32 %v240, %v300
      %v302 = vpop.f32.mrb[0].mxu0
      %303 = vdwg.mxu0
      %v304 = vmax.f32 %v298, 0.0
      %v305 = vmax.f32 %v301, 0.0
      %v307 = vsel %vm259, %v246, 0
      %v309 = vunpack.c.l.bf16 %v307
      %v310 = vunpack.c.h.bf16 %v307
      %v311 = vadd.f32 %v304, %v309
      %v312 = vadd.f32 %v305, %v310
      %v313 = vld [vmem:[%s3] sm:$0xf]
      %v314 = vld [vmem:[%s3 + $0x4] sm:$0xf]
      %v315 = vld [vmem:[%s3 + $0x8] sm:$0xf]
      %v316 = vld [vmem:[%s3 + $0xc] sm:$0xf]
      %v317 = vld [vmem:[%s3 + $0x10] sm:$0xf]
      %v318 = vld [vmem:[%s3 + $0x14] sm:$0xf]
      %v319 = vld [vmem:[%s3 + $0x18] sm:$0xf]
      %v320 = vld [vmem:[%s3 + $0x1c] sm:$0xf]
      %v321 = vld [vmem:[%s3 + $0x20] sm:$0xf]
      %v322 = vld [vmem:[%s3 + $0x24] sm:$0xf]
      %v323 = vld [vmem:[%s3 + $0x28] sm:$0xf]
      %v324 = vld [vmem:[%s3 + $0x2c] sm:$0xf]
      %v325 = vld [vmem:[%s3 + $0x30] sm:$0xf]
      %v326 = vld [vmem:[%s3 + $0x34] sm:$0xf]
      %v327 = vld [vmem:[%s3 + $0x38] sm:$0xf]
      %v328 = vld [vmem:[%s3 + $0x3c] sm:$0xf]
      %v329 = vld [vmem:[%s4] sm:$0x1]
      %v330 = vpack.c.bf16 %v312, %v311
      %v332 = vlaneseq
      %v333 = vshrl.u32 %v332, 7
      %v334 = vsub.s32 0, %v333
      %v335 = vrot.slane %v329, %v334
      %v353 = vunpack.c.l.b16 %v313
      %v354 = vunpack.c.l.b16 %v314
      %v355 = vunpack.c.l.b16 %v315
      %v356 = vunpack.c.l.b16 %v316
      %v357 = vunpack.c.l.b16 %v317
      %v358 = vunpack.c.l.b16 %v318
      %v359 = vunpack.c.l.b16 %v319
      %v360 = vunpack.c.l.b16 %v320
      %v361 = vunpack.c.l.b16 %v321
      %v362 = vunpack.c.l.b16 %v322
      %v363 = vunpack.c.l.b16 %v323
      %v364 = vunpack.c.l.b16 %v324
      %v365 = vunpack.c.l.b16 %v325
      %v366 = vunpack.c.l.b16 %v326
      %v367 = vunpack.c.l.b16 %v327
      %v368 = vunpack.c.l.b16 %v328
      %v369 = vpack.c.b16 %v354, %v353
      %v370 = vpack.c.b16 %v356, %v355
      %v371 = vpack.c.b16 %v358, %v357
      %v372 = vpack.c.b16 %v360, %v359
      %v373 = vpack.c.b16 %v362, %v361
      %v374 = vpack.c.b16 %v364, %v363
      %v375 = vpack.c.b16 %v366, %v365
      %v376 = vpack.c.b16 %v368, %v367
      %385 = vmatprep.subr.bf16.mxu0 0
      %386 = vmatpush1.bf16.msra.mxu0 %v369
      %387 = vmatprep.subr.bf16.mxu0 0
      %388 = vmatpush1.bf16.msra.mxu0 %v370
      %389 = vmatprep.subr.bf16.mxu0 0
      %390 = vmatpush1.bf16.msra.mxu0 %v371
      %391 = vmatprep.subr.bf16.mxu0 0
      %392 = vmatpush1.bf16.msra.mxu0 %v372
      %393 = vmatprep.subr.bf16.mxu0 0
      %394 = vmatpush1.bf16.msra.mxu0 %v373
      %395 = vmatprep.subr.bf16.mxu0 0
      %396 = vmatpush1.bf16.msra.mxu0 %v374
      %397 = vmatprep.subr.bf16.mxu0 0
      %398 = vmatpush1.bf16.msra.mxu0 %v375
      %399 = vmatprep.subr.bf16.mxu0 0
      %400 = vmatpush1.bf16.msra.mxu0 %v376
      %401 = vmatprep.subr.bf16.mxu0 0
      %402 = vmatpush1.bf16.msra.mxu0 0
      %403 = vmatprep.subr.bf16.mxu0 0
      %404 = vmatpush1.bf16.msra.mxu0 0
      %405 = vmatprep.subr.bf16.mxu0 0
      %406 = vmatpush1.bf16.msra.mxu0 0
      %407 = vmatprep.subr.bf16.mxu0 0
      %408 = vmatpush1.bf16.msra.mxu0 0
      %409 = vmatprep.subr.bf16.mxu0 0
      %410 = vmatpush1.bf16.msra.mxu0 0
      %411 = vmatprep.subr.bf16.mxu0 0
      %412 = vmatpush1.bf16.msra.mxu0 0
      %413 = vmatprep.subr.bf16.mxu0 0
      %414 = vmatpush1.bf16.msra.mxu0 0
      %415 = vmatprep.subr.bf16.mxu0 0
      %416 = vmatpush1.bf16.msra.mxu0 0
      %417 = vmatprep.mubr.bf16.mxu0 0
      %418 = vmatmul.mubr.bf16.gmra.mrb[0].mxu0 %v330
      %v419 = vpop.f32.mrb[0].mxu0
      %v420 = vadd.f32 %v335, %v419
      %v421 = vpop.f32.mrb[0].mxu0
      %v422 = vpop.f32.mrb[0].mxu0
      %v423 = vadd.f32 %v335, %v422
      %v424 = vpop.f32.mrb[0].mxu0
      %425 = vdwg.mxu0
      %vm426 = vcmask 130048
      %427 = vst.msk [vmem:[%s226] sm:$0xff] %vm426, %v420
      %428 = vst.msk [vmem:[%s226 + $0x8] sm:$0xff] %vm426, %v423
      %s429 = smul.u32 2, %s16
      %p430 = scmp.lt.s32.totalorder %s429, 3
      %s431 = scalar_select %p430, %s429, 3
      %s432 = smul.addr %s431, 8
      %s433 = scalar_lea.vmem %s5, %s432
      // Predicated region
      $region41: #{mlp_forward_fused.1} parent=39 // pred_check
        %p434 = pneg %p144
      $region42: #{mlp_forward_fused.1} parent=39 // pred_check_branch
        %436 = sbr.rel (%p434) target = $region44
      $region43: #{mlp_forward_fused.1} parent=39 // pred_region
        %s437 = smul.u32 2, %s16
      $region44: #{mlp_forward_fused.1} parent=39 // pred_fallthru
        _
    $region40: #{mlp_forward_fused.1} parent=5 // pred_fallthru
      _
    %p438 = scmp.le.s32.totalorder 2, %s11
    // Predicated region
    $region45: #{mlp_forward_fused.1} parent=5 // pred_check
      %p439 = pneg %p438
    $region46: #{mlp_forward_fused.1} parent=5 // pred_check_branch
      %441 = sbr.rel (%p439) target = $region48
    $region47: #{mlp_forward_fused.1} parent=5 // pred_region
      %s442 = ssub.s32 %s11, 2
      // Predicated region
      $region49: #{mlp_forward_fused.1} parent=47 // pred_check
        %p443 = pneg %p150
      $region50: #{mlp_forward_fused.1} parent=47 // pred_check_branch
        %445 = sbr.rel (%p443) target = $region52
      $region51: #{mlp_forward_fused.1} parent=47 // pred_region
        %s446 = smul.u32 2, %s17
        %p447 = scmp.lt.s32.totalorder %s446, 3
        %s448 = scalar_select %p447, %s446, 3
        %s449 = smul.addr %s448, 8
        %s450 = scalar_lea.vmem %s5, %s449
      $region52: #{mlp_forward_fused.1} parent=47 // pred_fallthru
        _
    $region48: #{mlp_forward_fused.1} parent=5 // pred_fallthru
      _
  $region6: #{mlp_forward_fused.1} parent=0 // loop_footer
    %s15 = sadd.s32 1, %s11
  $region7: #{mlp_forward_fused.1} parent=0 // loop_footer_branch
    %10 = sbr.rel target = $region3
  $region8: #{mlp_forward_fused.1} parent=0 // loop_exit
    _

// kernel: mlp_forward_fused.1
$region0: #{mlp_forward_fused.1}
  #allocation0 [shape = 'u32[]', space=smem, size = 0x4, offset = 0x4, fixed_abs, tag = 'smem constant byte address 0x4 - core index']
  #allocation1 [shape = 'u32[144,128]{1,0:T(1,128)}', space=vmem, size = 0x12000, scoped, tag = 'internal scratch']
  %s0 = inlined_call_operand.vmem [shape: bf16[32,32], index: 0, kind: input, shape index: {}]
  %s1 = inlined_call_operand.vmem [shape: bf16[32,128], index: 1, kind: input, shape index: {}]
  %s2 = inlined_call_operand.vmem [shape: f32[1,128], index: 2, kind: input, shape index: {}]
  %s3 = inlined_call_operand.vmem [shape: bf16[128,16], index: 3, kind: input, shape index: {}]
  %s4 = inlined_call_operand.vmem [shape: f32[1,16], index: 4, kind: input, shape index: {}]
  %s5 = inlined_call_operand.vmem [shape: f32[32,16], index: 5, kind: output, shape index: {}]
  %s6 = sld [smem:[#allocation0]]
  $region53: #{mlp_forward_fused.1} parent=0
    _
  %s8 = ssub.s32 1, %s6
  %s9 = scalar_select 0, %s8, %s6
  loop: start=0, step=1, limit=4
  $region2: #{mlp_forward_fused.1} parent=0 // loop_pre_header
    _
  $region3: #{mlp_forward_fused.1} parent=0 // loop_header
    %s11 = sphi 0, %s15
    %p12 = scmp.ge.s32.totalorder %s11, 4
    %s21 = sphi 0, %s23
    %s24 = sphi 0, %s21
    %s25 = sphi 0, %s24
    %s41 = sphi 0, %s25
    %s45 = sphi 0, %s45
    %s47 = sphi 0, %s45
    %s48 = sphi 0, %s47
    %s62 = sphi 0, %s48
    %s66 = sphi 0, %s66
    %s68 = sphi 0, %s66
    %s69 = sphi 0, %s68
    %s83 = sphi 0, %s69
    %s87 = sphi 0, %s87
    %s89 = sphi 0, %s87
    %s90 = sphi 0, %s89
    %s104 = sphi 0, %s90
    %s108 = sphi 0, %s108
    %s110 = sphi 0, %s108
    %s111 = sphi 0, %s110
    %s125 = sphi 0, %s111
    %s131 = sphi 0, %s133
    %s134 = sphi 0, %s131
    %s135 = sphi 0, %s134
    %s151 = sphi 0, %s135
  $region4: #{mlp_forward_fused.1} parent=0 // loop_header_branch
    %14 = sbr.rel (%p12) target = $region8
  $region5: #{mlp_forward_fused.1} parent=0 // loop_body
    %s16 = ssub.s32 %s11, 1
    %s17 = ssub.s32 %s11, 2
    %s18 = sadd.s32 %s11, 1
    %s19 = ssub.s32 %s11, %s18
    %p20 = scmp.eq.s32.totalorder %s19, 0
    %s22 = sadd.s32 %s21, 1
    %s23 = scalar_select %p20, %s21, %s22
    %p26 = pneg %p20
    %p27 = scmp.eq.s32.totalorder %s11, 1
    %p28 = por %p26, %p27
    %p29 = scmp.ne.s32.totalorder %s21, %s24
    %p30 = scmp.eq.s32.totalorder %s11, 0
    %p31 = por %p29, %p30
    %p32 = scmp.ne.s32.totalorder %s21, %s24
    %p33 = scmp.eq.s32.totalorder %s16, 1
    %p34 = por %p32, %p33
    %p35 = scmp.ne.s32.totalorder %s24, %s25
    %p36 = scmp.eq.s32.totalorder %s16, 0
    %p37 = por %p35, %p36
    %p38 = scmp.ne.s32.totalorder %s24, %s25
    %p39 = scmp.eq.s32.totalorder %s17, 1
    %p40 = por %p38, %p39
    %p42 = scmp.ne.s32.totalorder %s25, %s41
    %p43 = scmp.eq.s32.totalorder %s17, 0
    %p44 = por %p42, %p43
    %s46 = sadd.s32 %s45, 1
    %p49 = scmp.eq.s32.totalorder %s11, 1
    %p50 = scmp.ne.s32.totalorder %s45, %s47
    %p51 = scmp.eq.s32.totalorder %s11, 0
    %p52 = por %p50, %p51
    %p53 = scmp.ne.s32.totalorder %s45, %s47
    %p54 = scmp.eq.s32.totalorder %s16, 1
    %p55 = por %p53, %p54
    %p56 = scmp.ne.s32.totalorder %s47, %s48
    %p57 = scmp.eq.s32.totalorder %s16, 0
    %p58 = por %p56, %p57
    %p59 = scmp.ne.s32.totalorder %s47, %s48
    %p60 = scmp.eq.s32.totalorder %s17, 1
    %p61 = por %p59, %p60
    %p63 = scmp.ne.s32.totalorder %s48, %s62
    %p64 = scmp.eq.s32.totalorder %s17, 0
    %p65 = por %p63, %p64
    %s67 = sadd.s32 %s66, 1
    %p70 = scmp.eq.s32.totalorder %s11, 1
    %p71 = scmp.ne.s32.totalorder %s66, %s68
    %p72 = scmp.eq.s32.totalorder %s11, 0
    %p73 = por %p71, %p72
    %p74 = scmp.ne.s32.totalorder %s66, %s68
    %p75 = scmp.eq.s32.totalorder %s16, 1
    %p76 = por %p74, %p75
    %p77 = scmp.ne.s32.totalorder %s68, %s69
    %p78 = scmp.eq.s32.totalorder %s16, 0
    %p79 = por %p77, %p78
    %p80 = scmp.ne.s32.totalorder %s68, %s69
    %p81 = scmp.eq.s32.totalorder %s17, 1
    %p82 = por %p80, %p81
    %p84 = scmp.ne.s32.totalorder %s69, %s83
    %p85 = scmp.eq.s32.totalorder %s17, 0
    %p86 = por %p84, %p85
    %s88 = sadd.s32 %s87, 1
    %p91 = scmp.eq.s32.totalorder %s11, 1
    %p92 = scmp.ne.s32.totalorder %s87, %s89
    %p93 = scmp.eq.s32.totalorder %s11, 0
    %p94 = por %p92, %p93
    %p95 = scmp.ne.s32.totalorder %s87, %s89
    %p96 = scmp.eq.s32.totalorder %s16, 1
    %p97 = por %p95, %p96
    %p98 = scmp.ne.s32.totalorder %s89, %s90
    %p99 = scmp.eq.s32.totalorder %s16, 0
    %p100 = por %p98, %p99
    %p101 = scmp.ne.s32.totalorder %s89, %s90
    %p102 = scmp.eq.s32.totalorder %s17, 1
    %p103 = por %p101, %p102
    %p105 = scmp.ne.s32.totalorder %s90, %s104
    %p106 = scmp.eq.s32.totalorder %s17, 0
    %p107 = por %p105, %p106
    %s109 = sadd.s32 %s108, 1
    %p112 = scmp.eq.s32.totalorder %s11, 1
    %p113 = scmp.ne.s32.totalorder %s108, %s110
    %p114 = scmp.eq.s32.totalorder %s11, 0
    %p115 = por %p113, %p114
    %p116 = scmp.ne.s32.totalorder %s108, %s110
    %p117 = scmp.eq.s32.totalorder %s16, 1
    %p118 = por %p116, %p117
    %p119 = scmp.ne.s32.totalorder %s110, %s111
    %p120 = scmp.eq.s32.totalorder %s16, 0
    %p121 = por %p119, %p120
    %p122 = scmp.ne.s32.totalorder %s110, %s111
    %p123 = scmp.eq.s32.totalorder %s17, 1
    %p124 = por %p122, %p123
    %p126 = scmp.ne.s32.totalorder %s111, %s125
    %p127 = scmp.eq.s32.totalorder %s17, 0
    %p128 = por %p126, %p127
    %s129 = ssub.s32 %s11, %s18
    %p130 = scmp.eq.s32.totalorder %s129, 0
    %s132 = sadd.s32 %s131, 1
    %s133 = scalar_select %p130, %s131, %s132
    %p136 = pneg %p130
    %p137 = scmp.eq.s32.totalorder %s11, 1
    %p138 = por %p136, %p137
    %p139 = scmp.ne.s32.totalorder %s131, %s134
    %p140 = scmp.eq.s32.totalorder %s11, 0
    %p141 = por %p139, %p140
    %p142 = scmp.ne.s32.totalorder %s131, %s134
    %p143 = scmp.eq.s32.totalorder %s16, 1
    %p144 = por %p142, %p143
    %p145 = scmp.ne.s32.totalorder %s134, %s135
    %p146 = scmp.eq.s32.totalorder %s16, 0
    %p147 = por %p145, %p146
    %p148 = scmp.ne.s32.totalorder %s134, %s135
    %p149 = scmp.eq.s32.totalorder %s17, 1
    %p150 = por %p148, %p149
    %p152 = scmp.ne.s32.totalorder %s135, %s151
    %p153 = scmp.eq.s32.totalorder %s17, 0
    %p154 = por %p152, %p153
    %p155 = scmp.le.s32.totalorder 1, %s11
    %p156 = scmp.lt.s32.totalorder %s11, 3
    %p157 = pnand %p155, %p156
    %p158 = pneg %p157
    // Predicated region
    $region9: #{mlp_forward_fused.1} parent=5 // pred_check
      _
    $region10: #{mlp_forward_fused.1} parent=5 // pred_check_branch
      %160 = sbr.rel (%p157) target = $region12
    $region11: #{mlp_forward_fused.1} parent=5 // pred_region
      %s161 = ssub.s32 %s11, 1
      // Predicated region
      $region13: #{mlp_forward_fused.1} parent=11 // pred_check
        %p162 = pneg %p58
      $region14: #{mlp_forward_fused.1} parent=11 // pred_check_branch
        %164 = sbr.rel (%p162) target = $region16
      $region15: #{mlp_forward_fused.1} parent=11 // pred_region
        _
      $region16: #{mlp_forward_fused.1} parent=11 // pred_fallthru
        _
      // Predicated region
      $region17: #{mlp_forward_fused.1} parent=11 // pred_check
        %p165 = pneg %p79
      $region18: #{mlp_forward_fused.1} parent=11 // pred_check_branch
        %167 = sbr.rel (%p165) target = $region20
      $region19: #{mlp_forward_fused.1} parent=11 // pred_region
        _
      $region20: #{mlp_forward_fused.1} parent=11 // pred_fallthru
        _
      // Predicated region
      $region21: #{mlp_forward_fused.1} parent=11 // pred_check
        %p168 = pneg %p100
      $region22: #{mlp_forward_fused.1} parent=11 // pred_check_branch
        %170 = sbr.rel (%p168) target = $region24
      $region23: #{mlp_forward_fused.1} parent=11 // pred_region
        _
      $region24: #{mlp_forward_fused.1} parent=11 // pred_fallthru
        _
      // Predicated region
      $region25: #{mlp_forward_fused.1} parent=11 // pred_check
        %p171 = pneg %p121
      $region26: #{mlp_forward_fused.1} parent=11 // pred_check_branch
        %173 = sbr.rel (%p171) target = $region28
      $region27: #{mlp_forward_fused.1} parent=11 // pred_region
        _
      $region28: #{mlp_forward_fused.1} parent=11 // pred_fallthru
        _
    $region12: #{mlp_forward_fused.1} parent=5 // pred_fallthru
      _
    %p174 = scmp.lt.s32.totalorder %s11, 2
    // Predicated region
    $region29: #{mlp_forward_fused.1} parent=5 // pred_check
      %p175 = pneg %p174
    $region30: #{mlp_forward_fused.1} parent=5 // pred_check_branch
      %177 = sbr.rel (%p175) target = $region32
    $region31: #{mlp_forward_fused.1} parent=5 // pred_region
      // Predicated region
      $region33: #{mlp_forward_fused.1} parent=31 // pred_check
        %p178 = pneg %p31
      $region34: #{mlp_forward_fused.1} parent=31 // pred_check_branch
        %180 = sbr.rel (%p178) target = $region36
      $region35: #{mlp_forward_fused.1} parent=31 // pred_region
        %s181 = smul.u32 2, %s11
        %p182 = scmp.lt.s32.totalorder %s181, 3
        %s183 = scalar_select %p182, %s181, 3
        %s184 = smul.addr %s183, 4
        %s185 = scalar_lea.vmem %s0, %s184
        %s186 = smul.u32 2, %s11
      $region36: #{mlp_forward_fused.1} parent=31 // pred_fallthru
        _
    $region32: #{mlp_forward_fused.1} parent=5 // pred_fallthru
      _
    %p187 = scmp.le.s32.totalorder 1, %s11
    %p188 = scmp.lt.s32.totalorder %s11, 3
    %p189 = pnand %p187, %p188
    %p190 = pneg %p189
    // Predicated region
    $region37: #{mlp_forward_fused.1} parent=5 // pred_check
      _
    $region38: #{mlp_forward_fused.1} parent=5 // pred_check_branch
      %192 = sbr.rel (%p189) target = $region40
    $region39: #{mlp_forward_fused.1} parent=5 // pred_region
      %s193 = ssub.s32 %s11, 1
      %s194 = smul.u32 2, %s16
      %p195 = scmp.lt.s32.totalorder %s194, 3
      %s196 = scalar_select %p195, %s194, 3
      %s197 = smul.addr %s196, 4
      %s198 = scalar_lea.vmem %s0, %s197
      %p199 = pneg %p37
      %p200 = pneg %p34
      %p201 = pneg %p58
      %p202 = pneg %p55
      %p203 = pneg %p79
      %p204 = pneg %p76
      %p205 = pneg %p100
      %p206 = pneg %p97
      %p207 = pneg %p121
      %p208 = pneg %p118
      %p209 = pneg %p147
      %p210 = pneg %p144
      %s211 = smul.u32 2, %s16
      %p212 = scmp.lt.s32.totalorder %s211, 3
      %s213 = scalar_select %p212, %s211, 3
      %s214 = smul.addr %s213, 8
      %s215 = scalar_lea.vmem %s5, %s214
      %s216 = smul.u32 2, %s16
      %p217 = scmp.lt.s32.totalorder %s216, 3
      %s218 = scalar_select %p217, %s216, 3
      %s219 = smul.addr %s218, 4
      %s220 = scalar_lea.vmem %s0, %s219
      %s221 = smul.u32 2, %s16
      %s222 = smul.u32 2, %s16
      %p223 = scmp.lt.s32.totalorder %s222, 3
      %s224 = scalar_select %p223, %s222, 3
      %s225 = smul.addr %s224, 8
      %s226 = scalar_lea.vmem %s5, %s225
      %s227 = smul.u32 2, %s16
      %v229 = vld [vmem:[%s220] sm:$0xf]
      %v230 = vld [vmem:[%s220 + $0x4] sm:$0xf]
      %v231 = vld [vmem:[%s1] sm:$0xf]
      %v232 = vld [vmem:[%s1 + $0x4] sm:$0xf]
      %v233 = vld [vmem:[%s1 + $0x8] sm:$0xf]
      %v234 = vld [vmem:[%s1 + $0xc] sm:$0xf]
      %v235 = vld [vmem:[%s2] sm:$0x1]
      %v237 = vlaneseq
      %v238 = vshrl.u32 %v237, 7
      %v239 = vsub.s32 0, %v238
      %v240 = vrot.slane %v235, %v239
      %v244 = vunpack.c.l.b16 %v229
      %v245 = vunpack.c.l.b16 %v230
      %v246 = vpack.c.b16 %v245, %v244
      %v251 = vunpack.c.l.b16 %v231
      %v252 = vunpack.c.l.b16 %v232
      %v253 = vunpack.c.l.b16 %v233
      %v254 = vunpack.c.l.b16 %v234
      %v255 = vpack.c.b16 %v252, %v251
      %v256 = vpack.c.b16 %v254, %v253
      %vm259 = vcmask 261120
      %v261 = vsel %vm259, %v246, 0
      %263 = vmatprep.subr.bf16.mxu0 0
      %264 = vmatpush1.bf16.msra.mxu0 %v255
      %265 = vmatprep.subr.bf16.mxu0 0
      %266 = vmatpush1.bf16.msra.mxu0 %v256
      %267 = vmatprep.subr.bf16.mxu0 0
      %268 = vmatpush1.bf16.msra.mxu0 0
      %269 = vmatprep.subr.bf16.mxu0 0
      %270 = vmatpush1.bf16.msra.mxu0 0
      %271 = vmatprep.subr.bf16.mxu0 0
      %272 = vmatpush1.bf16.msra.mxu0 0
      %273 = vmatprep.subr.bf16.mxu0 0
      %274 = vmatpush1.bf16.msra.mxu0 0
      %275 = vmatprep.subr.bf16.mxu0 0
      %276 = vmatpush1.bf16.msra.mxu0 0
      %277 = vmatprep.subr.bf16.mxu0 0
      %278 = vmatpush1.bf16.msra.mxu0 0
      %279 = vmatprep.subr.bf16.mxu0 0
      %280 = vmatpush1.bf16.msra.mxu0 0
      %281 = vmatprep.subr.bf16.mxu0 0
      %282 = vmatpush1.bf16.msra.mxu0 0
      %283 = vmatprep.subr.bf16.mxu0 0
      %284 = vmatpush1.bf16.msra.mxu0 0
      %285 = vmatprep.subr.bf16.mxu0 0
      %286 = vmatpush1.bf16.msra.mxu0 0
      %287 = vmatprep.subr.bf16.mxu0 0
      %288 = vmatpush1.bf16.msra.mxu0 0
      %289 = vmatprep.subr.bf16.mxu0 0
      %290 = vmatpush1.bf16.msra.mxu0 0
      %291 = vmatprep.subr.bf16.mxu0 0
      %292 = vmatpush1.bf16.msra.mxu0 0
      %293 = vmatprep.subr.bf16.mxu0 0
      %294 = vmatpush1.bf16.msra.mxu0 0
      %295 = vmatprep.mubr.bf16.mxu0 0
      %296 = vmatmul.mubr.bf16.gmra.mrb[0].mxu0 %v261
      %v297 = vpop.f32.mrb[0].mxu0
      %v298 = vadd.f32 %v240, %v297
      %v299 = vpop.f32.mrb[0].mxu0
      %v300 = vpop.f32.mrb[0].mxu0
      %v301 = vadd.f32 %v240, %v300
      %v302 = vpop.f32.mrb[0].mxu0
      %303 = vdwg.mxu0
      %v304 = vmax.f32 %v298, 0.0
      %v305 = vmax.f32 %v301, 0.0
      %v307 = vsel %vm259, %v246, 0
      %v309 = vunpack.c.l.bf16 %v307
      %v310 = vunpack.c.h.bf16 %v307
      %v311 = vadd.f32 %v304, %v309
      %v312 = vadd.f32 %v305, %v310
      %v313 = vld [vmem:[%s3] sm:$0xf]
      %v314 = vld [vmem:[%s3 + $0x4] sm:$0xf]
      %v315 = vld [vmem:[%s3 + $0x8] sm:$0xf]
      %v316 = vld [vmem:[%s3 + $0xc] sm:$0xf]
      %v317 = vld [vmem:[%s3 + $0x10] sm:$0xf]
      %v318 = vld [vmem:[%s3 + $0x14] sm:$0xf]
      %v319 = vld [vmem:[%s3 + $0x18] sm:$0xf]
      %v320 = vld [vmem:[%s3 + $0x1c] sm:$0xf]
      %v321 = vld [vmem:[%s3 + $0x20] sm:$0xf]
      %v322 = vld [vmem:[%s3 + $0x24] sm:$0xf]
      %v323 = vld [vmem:[%s3 + $0x28] sm:$0xf]
      %v324 = vld [vmem:[%s3 + $0x2c] sm:$0xf]
      %v325 = vld [vmem:[%s3 + $0x30] sm:$0xf]
      %v326 = vld [vmem:[%s3 + $0x34] sm:$0xf]
      %v327 = vld [vmem:[%s3 + $0x38] sm:$0xf]
      %v328 = vld [vmem:[%s3 + $0x3c] sm:$0xf]
      %v329 = vld [vmem:[%s4] sm:$0x1]
      %v330 = vpack.c.bf16 %v312, %v311
      %v332 = vlaneseq
      %v333 = vshrl.u32 %v332, 7
      %v334 = vsub.s32 0, %v333
      %v335 = vrot.slane %v329, %v334
      %v353 = vunpack.c.l.b16 %v313
      %v354 = vunpack.c.l.b16 %v314
      %v355 = vunpack.c.l.b16 %v315
      %v356 = vunpack.c.l.b16 %v316
      %v357 = vunpack.c.l.b16 %v317
      %v358 = vunpack.c.l.b16 %v318
      %v359 = vunpack.c.l.b16 %v319
      %v360 = vunpack.c.l.b16 %v320
      %v361 = vunpack.c.l.b16 %v321
      %v362 = vunpack.c.l.b16 %v322
      %v363 = vunpack.c.l.b16 %v323
      %v364 = vunpack.c.l.b16 %v324
      %v365 = vunpack.c.l.b16 %v325
      %v366 = vunpack.c.l.b16 %v326
      %v367 = vunpack.c.l.b16 %v327
      %v368 = vunpack.c.l.b16 %v328
      %v369 = vpack.c.b16 %v354, %v353
      %v370 = vpack.c.b16 %v356, %v355
      %v371 = vpack.c.b16 %v358, %v357
      %v372 = vpack.c.b16 %v360, %v359
      %v373 = vpack.c.b16 %v362, %v361
      %v374 = vpack.c.b16 %v364, %v363
      %v375 = vpack.c.b16 %v366, %v365
      %v376 = vpack.c.b16 %v368, %v367
      %385 = vmatprep.subr.bf16.mxu0 0
      %386 = vmatpush1.bf16.msra.mxu0 %v369
      %387 = vmatprep.subr.bf16.mxu0 0
      %388 = vmatpush1.bf16.msra.mxu0 %v370
      %389 = vmatprep.subr.bf16.mxu0 0
      %390 = vmatpush1.bf16.msra.mxu0 %v371
      %391 = vmatprep.subr.bf16.mxu0 0
      %392 = vmatpush1.bf16.msra.mxu0 %v372
      %393 = vmatprep.subr.bf16.mxu0 0
      %394 = vmatpush1.bf16.msra.mxu0 %v373
      %395 = vmatprep.subr.bf16.mxu0 0
      %396 = vmatpush1.bf16.msra.mxu0 %v374
      %397 = vmatprep.subr.bf16.mxu0 0
      %398 = vmatpush1.bf16.msra.mxu0 %v375
      %399 = vmatprep.subr.bf16.mxu0 0
      %400 = vmatpush1.bf16.msra.mxu0 %v376
      %401 = vmatprep.subr.bf16.mxu0 0
      %402 = vmatpush1.bf16.msra.mxu0 0
      %403 = vmatprep.subr.bf16.mxu0 0
      %404 = vmatpush1.bf16.msra.mxu0 0
      %405 = vmatprep.subr.bf16.mxu0 0
      %406 = vmatpush1.bf16.msra.mxu0 0
      %407 = vmatprep.subr.bf16.mxu0 0
      %408 = vmatpush1.bf16.msra.mxu0 0
      %409 = vmatprep.subr.bf16.mxu0 0
      %410 = vmatpush1.bf16.msra.mxu0 0
      %411 = vmatprep.subr.bf16.mxu0 0
      %412 = vmatpush1.bf16.msra.mxu0 0
      %413 = vmatprep.subr.bf16.mxu0 0
      %414 = vmatpush1.bf16.msra.mxu0 0
      %415 = vmatprep.subr.bf16.mxu0 0
      %416 = vmatpush1.bf16.msra.mxu0 0
      %417 = vmatprep.mubr.bf16.mxu0 0
      %418 = vmatmul.mubr.bf16.gmra.mrb[0].mxu0 %v330
      %v419 = vpop.f32.mrb[0].mxu0
      %v420 = vadd.f32 %v335, %v419
      %v421 = vpop.f32.mrb[0].mxu0
      %v422 = vpop.f32.mrb[0].mxu0
      %v423 = vadd.f32 %v335, %v422
      %v424 = vpop.f32.mrb[0].mxu0
      %425 = vdwg.mxu0
      %vm426 = vcmask 130048
      %427 = vst.msk [vmem:[%s226] sm:$0xff] %vm426, %v420
      %428 = vst.msk [vmem:[%s226 + $0x8] sm:$0xff] %vm426, %v423
      %s429 = smul.u32 2, %s16
      %p430 = scmp.lt.s32.totalorder %s429, 3
      %s431 = scalar_select %p430, %s429, 3
      %s432 = smul.addr %s431, 8
      %s433 = scalar_lea.vmem %s5, %s432
      // Predicated region
      $region41: #{mlp_forward_fused.1} parent=39 // pred_check
        %p434 = pneg %p144
      $region42: #{mlp_forward_fused.1} parent=39 // pred_check_branch
        %436 = sbr.rel (%p434) target = $region44
      $region43: #{mlp_forward_fused.1} parent=39 // pred_region
        %s437 = smul.u32 2, %s16
      $region44: #{mlp_forward_fused.1} parent=39 // pred_fallthru
        _
    $region40: #{mlp_forward_fused.1} parent=5 // pred_fallthru
      _
    %p438 = scmp.le.s32.totalorder 2, %s11
    // Predicated region
    $region45: #{mlp_forward_fused.1} parent=5 // pred_check
      %p439 = pneg %p438
    $region46: #{mlp_forward_fused.1} parent=5 // pred_check_branch
      %441 = sbr.rel (%p439) target = $region48
    $region47: #{mlp_forward_fused.1} parent=5 // pred_region
      %s442 = ssub.s32 %s11, 2
      // Predicated region
      $region49: #{mlp_forward_fused.1} parent=47 // pred_check
        %p443 = pneg %p150
      $region50: #{mlp_forward_fused.1} parent=47 // pred_check_branch
        %445 = sbr.rel (%p443) target = $region52
      $region51: #{mlp_forward_fused.1} parent=47 // pred_region
        %s446 = smul.u32 2, %s17
        %p447 = scmp.lt.s32.totalorder %s446, 3
        %s448 = scalar_select %p447, %s446, 3
        %s449 = smul.addr %s448, 8
        %s450 = scalar_lea.vmem %s5, %s449
      $region52: #{mlp_forward_fused.1} parent=47 // pred_fallthru
        _
    $region48: #{mlp_forward_fused.1} parent=5 // pred_fallthru
      _
  $region6: #{mlp_forward_fused.1} parent=0 // loop_footer
    %s15 = sadd.s32 1, %s11
  $region7: #{mlp_forward_fused.1} parent=0 // loop_footer_branch
    %10 = sbr.rel target = $region3
  $region8: #{mlp_forward_fused.1} parent=0 // loop_exit
    _

</llo_original>
